<compile_context>
chip_gen: v6e
topology: v6e:2x2x1
jax: 0.10.0
libtpu: 0.0.40
codegen_flags: <defaults>
</compile_context>

<pallas_src>
import functools

import jax
import jax.numpy as jnp
import numpy as np
from jax.experimental import pallas as pl
from jax.experimental.pallas import tpu as pltpu

TM_MAX = 512                    # M tile (rows = flattened N*H*W output pixels)
                                # TODO(synk): raise to 1024 for the K-tiled layers on v6e (128 MiB VMEM).
TK = 2304                       # K tile for the K-tiled path (multiple of 256 for the 256x256 MXU)
K_SINGLE_MAX = 3072             # K <= this -> single full-K matmul step (covers ct1's odd/odd panel)
POOL_BLOCK_BYTES = 4 * 1024 * 1024
VMEM_LIMIT = 40 * 1024 * 1024   # > v5e's 16 MiB scoped default, < v7x's 64 MiB physical


def _round_up(x, m):
    return ((x + m - 1) // m) * m


# ----------------------------- Pallas kernels ------------------------------

def _matmul_bias_kernel(a_ref, w_ref, b_ref, o_ref, *, relu):
    """Single-step matmul: full K, VMEM-resident weight panel, fused bias(+ReLU)."""
    acc = jnp.dot(a_ref[...], w_ref[...], preferred_element_type=jnp.float32)
    acc = acc + b_ref[...]
    if relu:
        acc = jnp.maximum(acc, 0.0)
    o_ref[...] = acc.astype(o_ref.dtype)


def _matmul_bias_ktiled_kernel(a_ref, w_ref, b_ref, o_ref, acc_ref, *, relu):
    """K-tiled matmul: per-k (TK, Np) weight block, f32 VMEM accumulator,
    pl.when init/finalize, fused bias(+ReLU) on the last k step."""
    k = pl.program_id(1)

    @pl.when(k == 0)
    def _():
        acc_ref[...] = jnp.zeros_like(acc_ref)

    acc_ref[...] += jnp.dot(a_ref[...], w_ref[...],
                            preferred_element_type=jnp.float32)

    @pl.when(k == pl.num_programs(1) - 1)
    def _():
        acc = acc_ref[...] + b_ref[...]
        if relu:
            acc = jnp.maximum(acc, 0.0)
        o_ref[...] = acc.astype(o_ref.dtype)


def _maxpool_kernel(x_ref, o_ref):
    """2x2 max over a (tm, 2, W, C) block -> (tm, W//2, C). Single pass over x."""
    x = x_ref[...]                                      # (tm, 2, W, C)
    v = jnp.maximum(x[:, 0], x[:, 1])                   # vertical pair max: (tm, W, C)
    tm, w, c = v.shape
    # TODO(synk): a lane-dense (tm, Wo*C) store for the C=64 pool would avoid masked
    # partial stores, at the cost of a sublane->lane merge relayout in-kernel.
    o_ref[...] = jnp.max(v.reshape(tm, w // 2, 2, c), axis=2)   # horizontal pair max


# ----------------------------- Pallas wrappers ------------------------------

def matmul_bias(a, w, brow, n_out, relu, out_dtype=jnp.bfloat16):
    """(M, K) @ (K, Np) + brow with optional fused ReLU.

    `w` is the prepared, N-padded bf16 weight panel; `brow` is the (1, Np) f32 bias
    row; `n_out` is the true output width (padding columns are sliced off).
    """
    M, K = a.shape
    Kw, Np = w.shape
    assert Kw == K and brow.shape == (1, Np), (a.shape, w.shape, brow.shape)
    a = a.astype(jnp.bfloat16)

    tm = min(TM_MAX, _round_up(M, 8))
    if M <= TM_MAX and M > 256:
        # Guarantee >= 2 grid steps on the 'parallel' M axis so both v7x TensorCores
        # get work when the whole M would otherwise fit a single tile.
        tm = _round_up((M + 1) // 2, 8)
    Mp = _round_up(M, tm)
    if Mp != M:
        a = jnp.pad(a, ((0, Mp - M), (0, 0)))

    if K <= K_SINGLE_MAX:
        # Single-step: full (K, Np) weight panel stays VMEM-resident (constant map),
        # activation tiles stream over the parallel M axis.
        # TODO(synk): pipeline_mode=pl.Buffered(1) on the constant-index w/b specs
        # would reclaim the second (unused) weight buffer's VMEM.
        out = pl.pallas_call(
            functools.partial(_matmul_bias_kernel, relu=relu),
            out_shape=jax.ShapeDtypeStruct((Mp, Np), out_dtype),
            grid=(Mp // tm,),
            in_specs=[
                pl.BlockSpec((tm, K), lambda i: (i, 0)),     # streamed activations
                pl.BlockSpec((K, Np), lambda i: (0, 0)),     # resident weight panel
                pl.BlockSpec((1, Np), lambda i: (0, 0)),     # resident bias row
            ],
            out_specs=pl.BlockSpec((tm, Np), lambda i: (i, 0)),
            compiler_params=pltpu.CompilerParams(
                dimension_semantics=("parallel",),
                vmem_limit_bytes=VMEM_LIMIT),
        )(a, w, brow)
    else:
        Kp = _round_up(K, TK)
        if Kp != K:   # never taken in this net (only c6, K=4608=2*TK, uses this path)
            a = jnp.pad(a, ((0, 0), (0, Kp - K)))
            w = jnp.pad(w, ((0, Kp - K), (0, 0)))
        out = pl.pallas_call(
            functools.partial(_matmul_bias_ktiled_kernel, relu=relu),
            out_shape=jax.ShapeDtypeStruct((Mp, Np), out_dtype),
            grid=(Mp // tm, Kp // TK),
            in_specs=[
                pl.BlockSpec((tm, TK), lambda i, k: (i, k)),   # streamed activations
                pl.BlockSpec((TK, Np), lambda i, k: (k, 0)),   # per-k weight slab
                pl.BlockSpec((1, Np), lambda i, k: (0, 0)),    # resident bias row
            ],
            out_specs=pl.BlockSpec((tm, Np), lambda i, k: (i, 0)),
            scratch_shapes=[pltpu.VMEM((tm, Np), jnp.float32)],
            compiler_params=pltpu.CompilerParams(
                dimension_semantics=("parallel", "arbitrary"),
                vmem_limit_bytes=VMEM_LIMIT),
        )(a, w, brow)

    if Mp != M or Np != n_out:
        out = out[:M, :n_out]
    return out


def maxpool2x2(x):
    """2x2 stride-2 max pool on NHWC. Single pass: free reshape to (N*Ho, 2, W, C),
    the 2x2 max is taken inside the kernel (no pre-materialized strided slices)."""
    N, H, W, C = x.shape
    Ho, Wo = H // 2, W // 2
    M = N * Ho
    xr = x.reshape(M, 2, W, C)                 # free reshape (splits H, merges N*Ho)
    row_bytes = 2 * W * C * x.dtype.itemsize
    tm = max(1, min(M, POOL_BLOCK_BYTES // row_bytes))
    Mp = _round_up(M, tm)
    if Mp != M:
        xr = jnp.pad(xr, ((0, Mp - M), (0, 0), (0, 0), (0, 0)))
    out = pl.pallas_call(
        _maxpool_kernel,
        out_shape=jax.ShapeDtypeStruct((Mp, Wo, C), x.dtype),
        grid=(Mp // tm,),
        in_specs=[pl.BlockSpec((tm, 2, W, C), lambda i: (i, 0, 0, 0))],
        out_specs=pl.BlockSpec((tm, Wo, C), lambda i: (i, 0, 0)),
        compiler_params=pltpu.CompilerParams(
            dimension_semantics=("parallel",),
            vmem_limit_bytes=VMEM_LIMIT),
    )(xr)
    if Mp != M:
        out = out[:M]
    return out.reshape(N, Ho, Wo, C)


# ------------------------------ conv glue (JAX) -----------------------------

def conv3x3(x, layer, relu=True):
    """3x3 same-padding conv, NHWC. layer = (w (9*Cin, Np) bf16, brow, Cout)."""
    w, brow, cout = layer
    N, H, W, Cin = x.shape
    # TODO(synk): fuse the 9-tap patch gather into the matmul (halo DMA with
    # memory_space=pl.ANY) to avoid the HBM-materialized im2col; kept as XLA glue.
    xpad = jnp.pad(x, ((0, 0), (1, 1), (1, 1), (0, 0)))
    cols = [xpad[:, dy:dy + H, dx:dx + W, :] for dy in range(3) for dx in range(3)]
    patches = jnp.concatenate(cols, axis=-1).reshape(N * H * W, 9 * Cin)
    out = matmul_bias(patches, w, brow, cout, relu=relu)
    return out.reshape(N, H, W, cout)


def conv1x1(x, layer, relu=True, out_dtype=jnp.bfloat16):
    """1x1 conv, NHWC. layer = (w (Cin, Np) bf16, brow, Cout)."""
    w, brow, cout = layer
    N, H, W, Cin = x.shape
    out = matmul_bias(x.reshape(N * H * W, Cin), w, brow, cout,
                      relu=relu, out_dtype=out_dtype)
    return out.reshape(N, H, W, cout)


def convt3x3_s2(x, layer, relu=True):
    """ConvTranspose2d(k=3, stride=2, padding=1, output_padding=1), NHWC.

    Parity decomposition (out parity (py, px) of output pixel (2m+py, 2j+px)):
      (0,0): x[m,j]                      * w[.,.,1,1]
      (0,1): x[m,j]*w[1,2] + x[m,j+1]*w[1,0]
      (1,0): x[m,j]*w[2,1] + x[m+1,j]*w[0,1]
      (1,1): x[m,j]*w[2,2] + x[m,j+1]*w[2,0] + x[m+1,j]*w[0,2] + x[m+1,j+1]*w[0,0]
    (out-of-range x taps are zero). 4x fewer MACs than the zero-dilated formulation.
    """
    wee, weo, woe, woo, brow, cout = layer
    N, H, W, Cin = x.shape
    xp = jnp.pad(x, ((0, 0), (0, 1), (0, 1), (0, 0)))       # one zero row/col at end
    x00 = x
    x01 = xp[:, :H, 1:, :]                                   # x[m,   j+1]
    x10 = xp[:, 1:, :W, :]                                   # x[m+1, j  ]
    x11 = xp[:, 1:, 1:, :]                                   # x[m+1, j+1]
    M = N * H * W

    ee = matmul_bias(x00.reshape(M, Cin), wee, brow, cout, relu)
    eo = matmul_bias(jnp.concatenate([x00, x01], -1).reshape(M, 2 * Cin),
                     weo, brow, cout, relu)
    oe = matmul_bias(jnp.concatenate([x00, x10], -1).reshape(M, 2 * Cin),
                     woe, brow, cout, relu)
    oo = matmul_bias(jnp.concatenate([x00, x01, x10, x11], -1).reshape(M, 4 * Cin),
                     woo, brow, cout, relu)

    ee = ee.reshape(N, H, W, cout)
    eo = eo.reshape(N, H, W, cout)
    oe = oe.reshape(N, H, W, cout)
    oo = oo.reshape(N, H, W, cout)
    top = jnp.stack([ee, eo], axis=3)                        # (N, H, W, 2, Cout): px
    bot = jnp.stack([oe, oo], axis=3)
    out = jnp.stack([top, bot], axis=2)                      # (N, H, 2, W, 2, Cout): py
    return out.reshape(N, 2 * H, 2 * W, cout)


def reorganize(x, s=2):
    """YOLOv2-style space-to-depth matching ReOrganize: out channel = q*C + ci,
    q = sh*s + sw (pure data movement, kept as XLA glue)."""
    N, H, W, C = x.shape
    x = x.reshape(N, H // s, s, W // s, s, C)
    x = jnp.transpose(x, (0, 1, 3, 2, 4, 5))
    return x.reshape(N, H // s, W // s, s * s * C)


# ------------------------------- FashionNet ---------------------------------

def _pad_wb(w2d, b):
    """Pad the output dim to a multiple of 128, cast, reshape bias -> (1, Np)."""
    K, N = w2d.shape
    Np = _round_up(N, 128)
    if Np != N:
        w2d = jnp.pad(w2d, ((0, 0), (0, Np - N)))
        b = jnp.pad(b, (0, Np - N))
    return w2d.astype(jnp.bfloat16), b.astype(jnp.float32).reshape(1, Np), N


def _prep_conv(w, b):
    """torch conv weight (Cout, Cin, kh, kw) -> padded bf16 (kh*kw*Cin, Np)."""
    cout, cin, kh, kw = w.shape
    w2d = jnp.transpose(w, (2, 3, 1, 0)).reshape(kh * kw * cin, cout)
    return _pad_wb(w2d, b)


def _prep_convt(w, b):
    """torch ConvTranspose weight (Cin, Cout, 3, 3) -> 4 parity matmul panels."""
    cin, cout = w.shape[0], w.shape[1]

    def cat(taps):
        return jnp.concatenate([w[:, :, ky, kx] for ky, kx in taps], axis=0)

    mats = [w[:, :, 1, 1],                           # ee
            cat([(1, 2), (1, 0)]),                   # eo: [x00, x01]
            cat([(2, 1), (0, 1)]),                   # oe: [x00, x10]
            cat([(2, 2), (2, 0), (0, 2), (0, 0)])]   # oo: [x00, x01, x10, x11]
    ncp = _round_up(cout, 128)
    if ncp != cout:
        mats = [jnp.pad(m, ((0, 0), (0, ncp - cout))) for m in mats]
        b = jnp.pad(b, (0, ncp - cout))
    mats = [m.astype(jnp.bfloat16) for m in mats]
    brow = b.astype(jnp.float32).reshape(1, ncp)
    return (*mats, brow, cout)


def prepare_params(params):
    """One-time relayout of torch-layout weights into matmul-ready, N-padded bf16
    panels + (1, Np) f32 bias rows. Hoisted out of the per-forward path."""
    prep = {}
    for name in ('c1', 'c2', 'c3', 'c4', 'c5', 'c6', 'pw', 'cf'):
        prep[name] = _prep_conv(params[name + '_w'], params[name + '_b'])
    for name in ('ct1', 'ct2', 'ct3', 'ct4'):
        prep[name] = _prep_convt(params[name + '_w'], params[name + '_b'])
    return prep


def fashionnet_forward(prep, x_nchw):
    x = jnp.transpose(x_nchw, (0, 2, 3, 1)).astype(jnp.bfloat16)   # NCHW -> NHWC bf16
    # features1 = vgg11.features[:11]
    x = conv3x3(x, prep['c1'])
    x = maxpool2x2(x)
    x = conv3x3(x, prep['c2'])
    x = maxpool2x2(x)
    x = conv3x3(x, prep['c3'])
    x = conv3x3(x, prep['c4'])
    x1 = maxpool2x2(x)                                    # (N, H/8,  W/8,  256)
    # features2 = vgg11.features[11:16]
    x2 = conv3x3(x1, prep['c5'])
    x2 = conv3x3(x2, prep['c6'])
    x2 = maxpool2x2(x2)                                   # (N, H/16, W/16, 512)
    # pw_conv + reorg on the higher-resolution branch
    x1 = conv1x1(x1, prep['pw'])                          # (N, H/8,  W/8,  64)
    x1 = reorganize(x1, 2)                                # (N, H/16, W/16, 256)
    x = jnp.concatenate([x1, x2], axis=-1)                # (N, H/16, W/16, 768)
    # classifier: 4x (ConvTranspose2d s2 + ReLU) then 1x1 conv
    x = convt3x3_s2(x, prep['ct1'])
    x = convt3x3_s2(x, prep['ct2'])
    x = convt3x3_s2(x, prep['ct3'])
    x = convt3x3_s2(x, prep['ct4'])
    x = conv1x1(x, prep['cf'], relu=False, out_dtype=jnp.float32)  # (N, H, W, 7)
    return jnp.transpose(x, (0, 3, 1, 2))                 # NHWC -> NCHW


def init_params(key, n_classes=7):
    # TODO(synk): VGG11 pretrained weights are not loadable here; shapes match,
    # values are deterministic random init.
    def conv(k, cout, cin, ksz):
        kw, kb = jax.random.split(k)
        scale = 1.0 / np.sqrt(cin * ksz * ksz)
        return (jax.random.normal(kw, (cout, cin, ksz, ksz), jnp.float32) * scale,
                jax.random.normal(kb, (cout,), jnp.float32) * scale)

    def convt(k, cin, cout, ksz):
        kw, kb = jax.random.split(k)
        scale = 1.0 / np.sqrt(cin * ksz * ksz)
        return (jax.random.normal(kw, (cin, cout, ksz, ksz), jnp.float32) * scale,
                jax.random.normal(kb, (cout,), jnp.float32) * scale)

    keys = jax.random.split(key, 12)
    p = {}
    p['c1_w'], p['c1_b'] = conv(keys[0], 64, 3, 3)
    p['c2_w'], p['c2_b'] = conv(keys[1], 128, 64, 3)
    p['c3_w'], p['c3_b'] = conv(keys[2], 256, 128, 3)
    p['c4_w'], p['c4_b'] = conv(keys[3], 256, 256, 3)
    p['c5_w'], p['c5_b'] = conv(keys[4], 512, 256, 3)
    p['c6_w'], p['c6_b'] = conv(keys[5], 512, 512, 3)
    p['pw_w'], p['pw_b'] = conv(keys[6], 64, 256, 1)
    p['ct1_w'], p['ct1_b'] = convt(keys[7], 768, 512, 3)
    p['ct2_w'], p['ct2_b'] = convt(keys[8], 512, 256, 3)
    p['ct3_w'], p['ct3_b'] = convt(keys[9], 256, 128, 3)
    p['ct4_w'], p['ct4_b'] = convt(keys[10], 128, 64, 3)
    p['cf_w'], p['cf_b'] = conv(keys[11], n_classes, 64, 1)
    return p


def _convt_ref_nhwc(x, w, b):
    """Direct (slow) ConvTranspose2d(k=3,s=2,p=1,op=1)+ReLU reference in f32 (NHWC)."""
    N, H, W, Cin = x.shape
    Cout = w.shape[1]
    canvas = jnp.zeros((N, 2 * H + 2, 2 * W + 2, Cout), jnp.float32)
    xf = x.astype(jnp.float32)
    for ky in range(3):
        for kx in range(3):
            contrib = jnp.einsum('nhwc,cd->nhwd', xf,
                                 w[:, :, ky, kx].astype(jnp.float32))
            canvas = canvas.at[:, ky:ky + 2 * H:2, kx:kx + 2 * W:2, :].add(contrib)
    out = canvas[:, 1:1 + 2 * H, 1:1 + 2 * W, :] + b.astype(jnp.float32)
    return jnp.maximum(out, 0.0)


if __name__ == "__main__":
    key = jax.random.PRNGKey(0)
    kx, kp, kt = jax.random.split(key, 3)

    # --- numerical parity check for the parity-decomposed ConvTranspose2d ---
    k1, k2, k3 = jax.random.split(kt, 3)
    xt = jax.random.normal(k1, (1, 4, 4, 8), jnp.float32)
    wt = jax.random.normal(k2, (8, 16, 3, 3), jnp.float32) * 0.2
    bt = jax.random.normal(k3, (16,), jnp.float32) * 0.2
    got = convt3x3_s2(xt.astype(jnp.bfloat16), _prep_convt(wt, bt)).astype(jnp.float32)
    ref = _convt_ref_nhwc(xt.astype(jnp.bfloat16).astype(jnp.float32),
                          wt.astype(jnp.bfloat16).astype(jnp.float32), bt)
    err = float(jnp.max(jnp.abs(got - ref)) / (jnp.max(jnp.abs(ref)) + 1e-6))
    assert err < 3e-2, f"convT parity mismatch: rel err {err}"

    # --- full forward at a small shape consistent with the module (spatial % 16 == 0) ---
    x = jax.random.normal(kx, (2, 3, 32, 32), jnp.float32)
    params = init_params(kp, n_classes=7)
    prep = prepare_params(params)             # one-time weight relayout (bf16, padded)

    fwd = jax.jit(lambda inp: fashionnet_forward(prep, inp))
    out = jax.block_until_ready(fwd(x))

    assert out.shape == (2, 7, 32, 32), out.shape
    assert bool(jnp.all(jnp.isfinite(out)))
    print("KERNEL_OK")
</pallas_src>

<mosaic_0001>
module attributes {stable_mosaic.version = 11 : i64} {
  func.func @_matmul_bias_kernel(%arg0: i32, %arg1: memref<16x8xbf16, #tpu.memory_space<vmem>>, %arg2: memref<8x128xbf16, #tpu.memory_space<vmem>>, %arg3: memref<1x128xf32, #tpu.memory_space<vmem>>, %arg4: memref<16x128xbf16, #tpu.memory_space<vmem>>) attributes {dimension_semantics = [#tpu.dimension_semantics<parallel>], iteration_bounds = array<i64: 1>, scalar_prefetch = 0 : i64, scratch_operands = 0 : i64, tpu.core_type = #tpu.core_type<tc>, window_params = [{transform_indices = @transform_0, window_bounds = array<i64: 16, 8>}, {pipeline_mode = #tpu.pipeline_mode<synchronous>, transform_indices = @transform_1, window_bounds = array<i64: 8, 128>}, {pipeline_mode = #tpu.pipeline_mode<synchronous>, transform_indices = @transform_2, window_bounds = array<i64: 1, 128>}, {transform_indices = @transform_3, window_bounds = array<i64: 16, 128>}]} {
    %c0 = arith.constant 0 : index
    %c0_0 = arith.constant 0 : index
    %0 = vector.load %arg1[%c0, %c0_0] : memref<16x8xbf16, #tpu.memory_space<vmem>>, vector<16x8xbf16>
    %c0_1 = arith.constant 0 : index
    %c0_2 = arith.constant 0 : index
    %1 = vector.load %arg2[%c0_1, %c0_2] : memref<8x128xbf16, #tpu.memory_space<vmem>>, vector<8x128xbf16>
    %cst = arith.constant dense<0.000000e+00> : vector<16x128xf32>
    %2 = tpu.matmul %0, %1, %cst {dimension_numbers = #tpu.dot_dimension_numbers<[1], [0], [0], [1], [0, 0, 1, 1], [], []>} : vector<16x8xbf16>, vector<8x128xbf16>, vector<16x128xf32> -> vector<16x128xf32>
    %c0_3 = arith.constant 0 : index
    %c0_4 = arith.constant 0 : index
    %3 = vector.load %arg3[%c0_3, %c0_4] : memref<1x128xf32, #tpu.memory_space<vmem>>, vector<1x128xf32>
    %4 = vector.broadcast %3 : vector<1x128xf32> to vector<16x128xf32>
    %5 = arith.addf %2, %4 : vector<16x128xf32>
    %cst_5 = arith.constant 0.000000e+00 : f32
    %6 = vector.broadcast %cst_5 : f32 to vector<16x128xf32>
    %7 = arith.maximumf %5, %6 : vector<16x128xf32>
    %8 = arith.truncf %7 : vector<16x128xf32> to vector<16x128xbf16>
    %c0_6 = arith.constant 0 : index
    %c0_7 = arith.constant 0 : index
    %9 = vector.load %arg4[%c0_6, %c0_7] : memref<16x128xbf16, #tpu.memory_space<vmem>>, vector<16x128xbf16>
    tpu.vector_store %arg4[%c0_6, %c0_7], %8 {strides = array<i32>} : memref<16x128xbf16, #tpu.memory_space<vmem>>, vector<16x128xbf16>,
    return
  }
  func.func @transform_0(%arg0: i32) -> (i32, i32) {
    %c0_i32 = arith.constant 0 : i32
    %c0_i32_0 = arith.constant 0 : i32
    return %arg0, %c0_i32 : i32, i32
  }
  func.func @transform_1(%arg0: i32) -> (i32, i32) {
    %c0_i32 = arith.constant 0 : i32
    %c0_i32_0 = arith.constant 0 : i32
    %c0_i32_1 = arith.constant 0 : i32
    return %c0_i32, %c0_i32_0 : i32, i32
  }
  func.func @transform_2(%arg0: i32) -> (i32, i32) {
    %c0_i32 = arith.constant 0 : i32
    %c0_i32_0 = arith.constant 0 : i32
    %c0_i32_1 = arith.constant 0 : i32
    return %c0_i32, %c0_i32_0 : i32, i32
  }
  func.func @transform_3(%arg0: i32) -> (i32, i32) {
    %c0_i32 = arith.constant 0 : i32
    %c0_i32_0 = arith.constant 0 : i32
    return %arg0, %c0_i32 : i32, i32
  }
}

</mosaic_0001>

<llo_original>
// kernel: tpu_custom_call.1
$region0: #{tpu_custom_call.1}
  #allocation0 [shape = 'u32[]', space=smem, size = 0x4, offset = 0x4, fixed_abs, tag = 'smem constant byte address 0x4 - core index']
  #allocation1 [shape = 'u32[144,128]{1,0:T(1,128)}', space=vmem, size = 0x12000, scoped, tag = 'internal scratch']
  %s0 = inlined_call_operand.vmem [shape: bf16[16,8], index: 0, kind: input, shape index: {}]
  %s1 = inlined_call_operand.vmem [shape: bf16[8,128], index: 1, kind: input, shape index: {}]
  %s2 = inlined_call_operand.vmem [shape: f32[1,128], index: 2, kind: input, shape index: {}]
  %s3 = inlined_call_operand.hbm [shape: bf16[16,128], index: 3, kind: output, shape index: {}]
  %s4 = sld [smem:[#allocation0]]
  $region22: #{tpu_custom_call.1} parent=0
    _
  %s6 = ssub.s32 1, %s4
  %s7 = scalar_select 0, %s6, %s4
  $region1: #{tpu_custom_call.1} parent=0
    #allocation2 [shape = 'u8[4096]{0}', space=vmem, size = 0x1000, scoped, tag = 'output window, operand 0, single buffered']
    #allocation3 [shape = 's32[1]{0}', space=sflag, size = 0x4, scoped, tag = 'scoped memory for tpu_custom_call.1']
    %8 = vsyncpa [#allocation3], 0
    // Predicated region
    $region2: #{tpu_custom_call.1} parent=1 // pred_check
      _
    $region3: #{tpu_custom_call.1} parent=1 // pred_check_branch
      %10 = sbr.rel (0) target = $region5
    $region4: #{tpu_custom_call.1} parent=1 // pred_region
      _
    $region5: #{tpu_custom_call.1} parent=1 // pred_fallthru
      _
    // Predicated region
    $region6: #{tpu_custom_call.1} parent=1 // pred_check
      _
    $region7: #{tpu_custom_call.1} parent=1 // pred_check_branch
      %12 = sbr.rel (0) target = $region9
    $region8: #{tpu_custom_call.1} parent=1 // pred_region
      _
    $region9: #{tpu_custom_call.1} parent=1 // pred_fallthru
      _
    // Predicated region
    $region10: #{tpu_custom_call.1} parent=1 // pred_check
      _
    $region11: #{tpu_custom_call.1} parent=1 // pred_check_branch
      %14 = sbr.rel (0) target = $region13
    $region12: #{tpu_custom_call.1} parent=1 // pred_region
      _
    $region13: #{tpu_custom_call.1} parent=1 // pred_fallthru
      _
    %v16 = vld [vmem:[%s0] sm:$0xf]
    %v17 = vld [vmem:[%s0 + $0x4] sm:$0xf]
    %v18 = vld [vmem:[%s1] sm:$0xf]
    %v19 = vld [vmem:[%s2] sm:$0x1]
    %v21 = vlaneseq
    %v22 = vshrl.u32 %v21, 7
    %v23 = vsub.s32 0, %v22
    %v24 = vrot.slane %v19, %v23
    %v28 = vunpack.c.l.b16 %v16
    %v29 = vunpack.c.l.b16 %v17
    %v30 = vpack.c.b16 %v29, %v28
    %vm31 = vcmask 64512
    %v33 = vsel %vm31, %v30, 0
    %vm35 = vcmask 1043456
    %v37 = vsel %vm35, %v18, 0
    %39 = vmatprep.subr.bf16.mxu0 0
    %40 = vmatpush1.bf16.msra.mxu0 0
    %41 = vmatprep.subr.bf16.mxu0 0
    %42 = vmatpush1.bf16.msra.mxu0 0
    %43 = vmatprep.subr.bf16.mxu0 0
    %44 = vmatpush1.bf16.msra.mxu0 0
    %45 = vmatprep.subr.bf16.mxu0 0
    %46 = vmatpush1.bf16.msra.mxu0 0
    %47 = vmatprep.subr.bf16.mxu0 0
    %48 = vmatpush1.bf16.msra.mxu0 0
    %49 = vmatprep.subr.bf16.mxu0 0
    %50 = vmatpush1.bf16.msra.mxu0 0
    %51 = vmatprep.subr.bf16.mxu0 0
    %52 = vmatpush1.bf16.msra.mxu0 0
    %53 = vmatprep.subr.bf16.mxu0 0
    %54 = vmatpush1.bf16.msra.mxu0 %v37
    %55 = vmatprep.subr.bf16.mxu0 0
    %56 = vmatpush2.bf16.msra.mxu0 0
    %57 = vmatprep.subr.bf16.mxu0 0
    %58 = vmatpush2.bf16.msra.mxu0 0
    %59 = vmatprep.subr.bf16.mxu0 0
    %60 = vmatpush2.bf16.msra.mxu0 0
    %61 = vmatprep.subr.bf16.mxu0 0
    %62 = vmatpush2.bf16.msra.mxu0 0
    %63 = vmatprep.subr.bf16.mxu0 0
    %64 = vmatpush2.bf16.msra.mxu0 0
    %65 = vmatprep.subr.bf16.mxu0 0
    %66 = vmatpush2.bf16.msra.mxu0 0
    %67 = vmatprep.subr.bf16.mxu0 0
    %68 = vmatpush2.bf16.msra.mxu0 0
    %69 = vmatprep.subr.bf16.mxu0 0
    %70 = vmatpush2.bf16.msra.mxu0 0
    %71 = vmatprep.mubr.bf16.mxu0 0
    %72 = vmatmul.mubr.bf16.gmra.mxu0 %v33
    %v73 = vpop.f32.mrf.mxu0
    %v74 = vadd.f32 %v24, %v73
    %v75 = vpop.f32.mrf.mxu0
    %v76 = vpop.f32.mrf.mxu0
    %v77 = vadd.f32 %v24, %v76
    %v78 = vpop.f32.mrf.mxu0
    %79 = vdwg.mxu0
    %v80 = vmax.f32 %v74, 0.0
    %v81 = vmax.f32 %v77, 0.0
    %v82 = vpack.c.bf16 %v81, %v80
    %v84 = vunpack.c.l.b16 %v82
    %v85 = vunpack.c.h.b16 %v82
    %v86 = vpack.c.b16 %v84, %v84
    %v87 = vpack.c.b16 %v85, %v85
    %90 = vst [vmem:[#allocation2] sm:$0xf] %v86
    %91 = vst [vmem:[#allocation2 + $0x4] sm:$0xf] %v87
    // Predicated region
    $region14: #{tpu_custom_call.1} parent=1 // pred_check
      _
    $region15: #{tpu_custom_call.1} parent=1 // pred_check_branch
      %93 = sbr.rel (0) target = $region17
    $region16: #{tpu_custom_call.1} parent=1 // pred_region
      %s95 = ssub.s32 128, 128
      %96 = vsyncadd [#allocation3], %s95
      %s97 = sshll.u32 [#allocation2], 4
      %s98 = int_to_ptr.vmem [resolvable:$true] %s97
      %103 = dma.vmem_to_hbm [thread:$0]  %s98, 128, %s3, [#allocation3], 64, 64, 4
    $region17: #{tpu_custom_call.1} parent=1 // pred_fallthru
      _
    // Predicated region
    $region18: #{tpu_custom_call.1} parent=1 // pred_check
      _
    $region19: #{tpu_custom_call.1} parent=1 // pred_check_branch
      %105 = sbr.rel (0) target = $region21
    $region20: #{tpu_custom_call.1} parent=1 // pred_region
      %106 = dma.done [#allocation3], 128
    $region21: #{tpu_custom_call.1} parent=1 // pred_fallthru
      _
    %107 = vsyncpa [#allocation3], 1

</llo_original>
